<compile_context>
chip_gen: v5e
topology: v5e:2x2
jax: 0.10.0
libtpu: 0.0.40
codegen_flags: <defaults>
</compile_context>

<pallas_src>
import functools
import math

import numpy as np
import jax
import jax.numpy as jnp
from jax.experimental import pallas as pl
from jax.experimental.pallas import tpu as pltpu


# ----------------------------------------------------------------------------
# Static (trace-time) coefficient construction — PyTorch interpolate semantics
# ----------------------------------------------------------------------------
def _output_size(in_hw, size, scale_factor):
    h, w = in_hw
    if size is not None:
        if isinstance(size, (tuple, list)):
            return int(size[0]), int(size[1])
        return int(size), int(size)
    if scale_factor is None:
        raise ValueError("either size or scale_factor must be specified")
    if isinstance(scale_factor, (tuple, list)):
        sh, sw = scale_factor
    else:
        sh = sw = scale_factor
    return int(math.floor(h * sh)), int(math.floor(w * sw))


def _axis_coeffs(in_size, out_size, mode, align_corners):
    """Per-output-coordinate taps (i0, i1) and fractional weight, PyTorch rules."""
    o = np.arange(out_size, dtype=np.float64)
    if mode == "nearest":
        i0 = np.floor(o * (in_size / out_size)).astype(np.int64)
        i0 = np.clip(i0, 0, in_size - 1)
        return i0, i0, np.zeros(out_size, dtype=np.float64)
    # bilinear
    if align_corners:
        if out_size > 1:
            src = o * ((in_size - 1) / (out_size - 1))
        else:
            src = np.zeros(out_size, dtype=np.float64)
    else:
        src = (o + 0.5) * (in_size / out_size) - 0.5
        src = np.maximum(src, 0.0)
    i0 = np.clip(np.floor(src).astype(np.int64), 0, in_size - 1)
    i1 = np.minimum(i0 + 1, in_size - 1)
    frac = src - i0
    return i0, i1, frac


def _interp_matrix(in_size, out_size, mode, align_corners):
    """Dense [out_size, in_size] tap matrix (<=2 non-zeros per row)."""
    i0, i1, f = _axis_coeffs(in_size, out_size, mode, align_corners)
    m = np.zeros((out_size, in_size), dtype=np.float64)
    rows = np.arange(out_size)
    np.add.at(m, (rows, i0), 1.0 - f)
    np.add.at(m, (rows, i1), f)
    return m.astype(np.float32)


def _pick_channel_block(c, h, w, oh, ow, itemsize, budget_bytes=6 * 1024 * 1024):
    """Largest divisor of C whose double-buffered in+out blocks fit the budget."""
    per_chan = (h * w + oh * ow) * itemsize * 2  # x2 for double buffering
    cap = max(1, budget_bytes // max(per_chan, 1))
    best = 1
    for d in range(1, c + 1):
        if c % d == 0 and d <= cap:
            best = d
    return best


# ----------------------------------------------------------------------------
# Pallas kernel
# ----------------------------------------------------------------------------
def _interp_kernel(wh_ref, wwt_ref, x_ref, o_ref, *, bc):
    """out[0, ci] = Wh @ x[0, ci] @ Ww^T for the BC channels of this block."""
    wh = wh_ref[...]     # [OH, H]  f32 (resident across the whole grid)
    wwt = wwt_ref[...]   # [W, OW]  f32

    def body(ci, carry):
        img = x_ref[0, ci].astype(jnp.float32)                        # [H, W]
        t = jnp.dot(wh, img, preferred_element_type=jnp.float32)      # [OH, W]
        o = jnp.dot(t, wwt, preferred_element_type=jnp.float32)       # [OH, OW]
        o_ref[0, ci] = o.astype(o_ref.dtype)
        return carry

    jax.lax.fori_loop(0, bc, body, 0)


def pallas_interpolate_2d(x, *, size=None, scale_factor=None, mode="nearest",
                          align_corners=False):
    """NCHW 2-D interpolation (nearest / bilinear), PyTorch semantics."""
    if x.ndim != 4:
        raise NotImplementedError("only 4-D NCHW inputs are supported")
    if mode not in ("nearest", "bilinear"):
        # TODO(synk): 'linear'/'bicubic'/'area'/'trilinear' and antialias are not implemented.
        raise NotImplementedError(f"mode={mode!r} is not implemented")

    n, c, h, w = x.shape
    oh, ow = _output_size((h, w), size, scale_factor)

    # Tap matrices are compile-time constants (functions of static shapes only).
    wh = jnp.asarray(_interp_matrix(h, oh, mode, align_corners))        # [OH, H]
    wwt = jnp.asarray(_interp_matrix(w, ow, mode, align_corners).T)     # [W, OW]

    bc = _pick_channel_block(c, h, w, oh, ow, jnp.dtype(x.dtype).itemsize)
    grid = (n, c // bc)

    return pl.pallas_call(
        functools.partial(_interp_kernel, bc=bc),
        out_shape=jax.ShapeDtypeStruct((n, c, oh, ow), x.dtype),
        grid_spec=pltpu.PrefetchScalarGridSpec(
            num_scalar_prefetch=0,
            grid=grid,
            in_specs=[
                pl.BlockSpec((oh, h), lambda ni, ci: (0, 0)),            # Wh
                pl.BlockSpec((w, ow), lambda ni, ci: (0, 0)),            # Ww^T
                pl.BlockSpec((1, bc, h, w), lambda ni, ci: (ni, ci, 0, 0)),
            ],
            out_specs=pl.BlockSpec((1, bc, oh, ow), lambda ni, ci: (ni, ci, 0, 0)),
        ),
        compiler_params=pltpu.CompilerParams(
            dimension_semantics=("parallel", "parallel")),
    )(wh, wwt, x)


class Interpolate:
    """Pallas-TPU equivalent of the PyTorch `Interpolate` module (forward only)."""

    def __init__(self, size=None, scale_factor=None, mode="nearest",
                 align_corners=False):
        self.size = size
        self.scale_factor = scale_factor
        self.mode = mode
        # NOTE: like nn.functional.interpolate, align_corners only matters for
        # the interpolating (bilinear) mode; it is ignored for 'nearest'.
        self.align_corners = align_corners

    def __call__(self, x):
        return pallas_interpolate_2d(
            x, size=self.size, scale_factor=self.scale_factor,
            mode=self.mode, align_corners=self.align_corners)


# ----------------------------------------------------------------------------
# Plain-JAX reference (gather + blend) for a correctness sanity check
# ----------------------------------------------------------------------------
def reference_interpolate(x, *, size=None, scale_factor=None, mode="nearest",
                          align_corners=False):
    n, c, h, w = x.shape
    oh, ow = _output_size((h, w), size, scale_factor)
    y0, y1, fy = _axis_coeffs(h, oh, mode, align_corners)
    x0, x1, fx = _axis_coeffs(w, ow, mode, align_corners)
    fy = jnp.asarray(fy, jnp.float32).reshape(1, 1, oh, 1)
    fx = jnp.asarray(fx, jnp.float32).reshape(1, 1, 1, ow)
    xf = x.astype(jnp.float32)
    r = xf[:, :, y0, :] * (1.0 - fy) + xf[:, :, y1, :] * fy
    out = r[:, :, :, x0] * (1.0 - fx) + r[:, :, :, x1] * fx
    return out.astype(x.dtype)


if __name__ == "__main__":
    key = jax.random.PRNGKey(0)
    x = jax.random.normal(key, (2, 4, 16, 16), jnp.float32)  # NCHW

    # UNet16 decoder usage: Interpolate(scale_factor=2, mode='bilinear')
    bilinear = Interpolate(scale_factor=2, mode="bilinear", align_corners=False)
    # Module default mode
    nearest = Interpolate(scale_factor=2, mode="nearest")

    fwd_b = jax.jit(lambda t: bilinear(t))
    fwd_n = jax.jit(lambda t: nearest(t))

    y_b = jax.block_until_ready(fwd_b(x))
    y_n = jax.block_until_ready(fwd_n(x))

    assert y_b.shape == (2, 4, 32, 32) and y_b.dtype == jnp.float32
    assert y_n.shape == (2, 4, 32, 32) and y_n.dtype == jnp.float32

    ref_b = reference_interpolate(x, scale_factor=2, mode="bilinear",
                                  align_corners=False)
    ref_n = reference_interpolate(x, scale_factor=2, mode="nearest")
    assert bool(jnp.allclose(y_b, ref_b, atol=1e-3, rtol=1e-3))
    assert bool(jnp.allclose(y_n, ref_n, atol=1e-3, rtol=1e-3))

    print("KERNEL_OK")
</pallas_src>

<mosaic_0001>
module attributes {stable_mosaic.version = 11 : i64} {
  func.func @_interp_kernel(%arg0: i32, %arg1: i32, %arg2: memref<32x16xf32, #tpu.memory_space<vmem>>, %arg3: memref<16x32xf32, #tpu.memory_space<vmem>>, %arg4: memref<1x4x16x16xf32, #tpu.memory_space<vmem>>, %arg5: memref<1x4x32x32xf32, #tpu.memory_space<vmem>>) attributes {dimension_semantics = [#tpu.dimension_semantics<parallel>, #tpu.dimension_semantics<parallel>], iteration_bounds = array<i64: 2, 1>, scalar_prefetch = 0 : i64, scratch_operands = 0 : i64, tpu.core_type = #tpu.core_type<tc>, window_params = [{pipeline_mode = #tpu.pipeline_mode<synchronous>, transform_indices = @transform_0, window_bounds = array<i64: 32, 16>}, {pipeline_mode = #tpu.pipeline_mode<synchronous>, transform_indices = @transform_1, window_bounds = array<i64: 16, 32>}, {transform_indices = @transform_2, window_bounds = array<i64: 1, 4, 16, 16>}, {transform_indices = @transform_3, window_bounds = array<i64: 1, 4, 32, 32>}]} {
    %c0 = arith.constant 0 : index
    %c0_0 = arith.constant 0 : index
    %0 = vector.load %arg2[%c0, %c0_0] : memref<32x16xf32, #tpu.memory_space<vmem>>, vector<32x16xf32>
    %c0_1 = arith.constant 0 : index
    %c0_2 = arith.constant 0 : index
    %1 = vector.load %arg3[%c0_1, %c0_2] : memref<16x32xf32, #tpu.memory_space<vmem>>, vector<16x32xf32>
    %c0_i32 = arith.constant 0 : i32
    %c4_i32 = arith.constant 4 : i32
    %2 = arith.addi %c0_i32, %c4_i32 : i32
    %c1_i32 = arith.constant 1 : i32
    scf.for %arg6 = %c0_i32 to %2 step %c1_i32  : i32 {
      %c0_4 = arith.constant 0 : index
      %3 = arith.index_cast %arg6 : i32 to index
      %c0_5 = arith.constant 0 : index
      %c0_6 = arith.constant 0 : index
      %4 = vector.load %arg4[%c0_4, %3, %c0_5, %c0_6] : memref<1x4x16x16xf32, #tpu.memory_space<vmem>>, vector<1x1x16x16xf32>
      %5 = vector.shape_cast %4 : vector<1x1x16x16xf32> to vector<16x16xf32>
      %cst = arith.constant dense<0.000000e+00> : vector<32x16xf32>
      %6 = tpu.matmul %0, %5, %cst {dimension_numbers = #tpu.dot_dimension_numbers<[1], [0], [0], [1], [0, 0, 1, 1], [], []>} : vector<32x16xf32>, vector<16x16xf32>, vector<32x16xf32> -> vector<32x16xf32>
      %cst_7 = arith.constant dense<0.000000e+00> : vector<32x32xf32>
      %7 = tpu.matmul %6, %1, %cst_7 {dimension_numbers = #tpu.dot_dimension_numbers<[1], [0], [0], [1], [0, 0, 1, 1], [], []>} : vector<32x16xf32>, vector<16x32xf32>, vector<32x32xf32> -> vector<32x32xf32>
      %c0_8 = arith.constant 0 : index
      %8 = arith.index_cast %arg6 : i32 to index
      %c0_9 = arith.constant 0 : index
      %c0_10 = arith.constant 0 : index
      %9 = vector.load %arg5[%c0_8, %8, %c0_9, %c0_10] : memref<1x4x32x32xf32, #tpu.memory_space<vmem>>, vector<1x1x32x32xf32>
      %10 = vector.shape_cast %9 : vector<1x1x32x32xf32> to vector<32x32xf32>
      %11 = vector.shape_cast %7 : vector<32x32xf32> to vector<1x1x32x32xf32>
      tpu.vector_store %arg5[%c0_8, %8, %c0_9, %c0_10], %11 {strides = array<i32>} : memref<1x4x32x32xf32, #tpu.memory_space<vmem>>, vector<1x1x32x32xf32>,
    }
    %c4_i32_3 = arith.constant 4 : i32
    return
  }
  func.func @transform_0(%arg0: i32, %arg1: i32) -> (i32, i32) {
    %c0_i32 = arith.constant 0 : i32
    %c0_i32_0 = arith.constant 0 : i32
    %c0_i32_1 = arith.constant 0 : i32
    return %c0_i32, %c0_i32_0 : i32, i32
  }
  func.func @transform_1(%arg0: i32, %arg1: i32) -> (i32, i32) {
    %c0_i32 = arith.constant 0 : i32
    %c0_i32_0 = arith.constant 0 : i32
    %c0_i32_1 = arith.constant 0 : i32
    return %c0_i32, %c0_i32_0 : i32, i32
  }
  func.func @transform_2(%arg0: i32, %arg1: i32) -> (i32, i32, i32, i32) {
    %c0_i32 = arith.constant 0 : i32
    %c0_i32_0 = arith.constant 0 : i32
    %c0_i32_1 = arith.constant 0 : i32
    return %arg0, %arg1, %c0_i32, %c0_i32_0 : i32, i32, i32, i32
  }
  func.func @transform_3(%arg0: i32, %arg1: i32) -> (i32, i32, i32, i32) {
    %c0_i32 = arith.constant 0 : i32
    %c0_i32_0 = arith.constant 0 : i32
    %c0_i32_1 = arith.constant 0 : i32
    return %arg0, %arg1, %c0_i32, %c0_i32_0 : i32, i32, i32, i32
  }
}

</mosaic_0001>

<llo_original>
// kernel: _lambda_.1
$region0: #{_lambda_.1}
  #allocation0 [shape = 'u32[]', space=smem, size = 0x4, offset = 0x4, fixed_abs, tag = 'smem constant byte address 0x4 - core index']
  #allocation1 [shape = 'u32[72,128]{1,0:T(1,128)}', space=vmem, size = 0x9000, scoped, tag = 'internal scratch']
  %s0 = inlined_call_operand.hbm [shape: f32[32,16], index: 0, kind: input, shape index: {}]
  %s1 = inlined_call_operand.hbm [shape: f32[16,32], index: 1, kind: input, shape index: {}]
  %s2 = inlined_call_operand.hbm [shape: f32[2,4,16,16], index: 2, kind: input, shape index: {}]
  %s3 = inlined_call_operand.hbm [shape: f32[2,4,32,32], index: 3, kind: output, shape index: {}]
  %s4 = sld [smem:[#allocation0]]
  $region64: #{_lambda_.1} parent=0
    _
  %s6 = ssub.s32 1, %s4
  %s7 = scalar_select 0, %s6, %s4
  $region1: #{_lambda_.1} parent=0
    #allocation2 [shape = 'u8[16384]{0}', space=vmem, size = 0x4000, scoped, tag = 'input window, operand 0, single buffered']
    #allocation3 [shape = 's32[2]{0}', space=sflag, size = 0x8, scoped, tag = 'scoped memory for _lambda_.1']
    #allocation4 [shape = 's32[2]{0}', space=sflag, size = 0x8, scoped, tag = 'scoped memory for _lambda_.1']
    #allocation5 [shape = 'u8[8192]{0}', space=vmem, size = 0x2000, scoped, tag = 'input window, operand 1, single buffered']
    #allocation6 [shape = 's32[1]{0}', space=sflag, size = 0x4, scoped, tag = 'scoped memory for _lambda_.1']
    #allocation7 [shape = 'u8[65536]{0}', space=vmem, size = 0x10000, scoped, tag = 'input window, operand 2']
    #allocation8 [shape = 'u8[131072]{0}', space=vmem, size = 0x20000, scoped, tag = 'output window, operand 0']
    %8 = vsyncpa [#allocation3], 0
    %9 = vsyncpa [#allocation6], 0
    %10 = vsyncpa [#allocation4], 0
    %s11 = scalar_lea.sflag [#allocation4], 1
    %12 = vsyncpa %s11, 0
    loop: start=0, step=1, limit=4
    $region2: #{_lambda_.1} parent=1 // loop_pre_header
      _
    $region3: #{_lambda_.1} parent=1 // loop_header
      %s14 = sphi 0, %s18
      %p15 = scmp.ge.s32.totalorder %s14, 4
      %s21 = sphi 0, %s33
      %s22 = sphi 0, %s29
      %s23 = sphi 0, %s21
      %s24 = sphi 0, %s22
      %s25 = sphi 0, %s23
      %s26 = sphi 0, %s24
      %s34 = sphi 0, %s34
      %s36 = sphi 0, %s34
      %s37 = sphi 0, %s36
      %s51 = sphi 0, %s37
      %s55 = sphi 0, %s55
      %s57 = sphi 0, %s55
      %s58 = sphi 0, %s57
      %s72 = sphi 0, %s58
      %s80 = sphi 0, %s82
      %s83 = sphi 0, %s80
      %s84 = sphi 0, %s83
      %s100 = sphi 0, %s84
      %s108 = sphi 0, %s110
      %s111 = sphi 0, %s108
      %s112 = sphi 0, %s111
      %s128 = sphi 0, %s112
    $region4: #{_lambda_.1} parent=1 // loop_header_branch
      %17 = sbr.rel (%p15) target = $region8
    $region5: #{_lambda_.1} parent=1 // loop_body
      %s19 = ssub.s32 %s14, 1
      %s20 = ssub.s32 %s14, 2
      %s27 = sadd.s32 1, %s22
      %p28 = scmp.ge.s32.totalorder %s27, 1
      %s29 = scalar_select %p28, 0, %s27
      %s30 = sadd.s32 1, %s21
      %s31 = scalar_select %p28, %s30, %s21
      %p32 = scmp.ge.s32.totalorder %s31, 2
      %s33 = scalar_select %p32, 0, %s31
      %s35 = sadd.s32 %s34, 1
      %p38 = scmp.eq.s32.totalorder %s14, 1
      %p39 = scmp.ne.s32.totalorder %s34, %s36
      %p40 = scmp.eq.s32.totalorder %s14, 0
      %p41 = por %p39, %p40
      %p42 = scmp.ne.s32.totalorder %s34, %s36
      %p43 = scmp.eq.s32.totalorder %s19, 1
      %p44 = por %p42, %p43
      %p45 = scmp.ne.s32.totalorder %s36, %s37
      %p46 = scmp.eq.s32.totalorder %s19, 0
      %p47 = por %p45, %p46
      %p48 = scmp.ne.s32.totalorder %s36, %s37
      %p49 = scmp.eq.s32.totalorder %s20, 1
      %p50 = por %p48, %p49
      %p52 = scmp.ne.s32.totalorder %s37, %s51
      %p53 = scmp.eq.s32.totalorder %s20, 0
      %p54 = por %p52, %p53
      %s56 = sadd.s32 %s55, 1
      %p59 = scmp.eq.s32.totalorder %s14, 1
      %p60 = scmp.ne.s32.totalorder %s55, %s57
      %p61 = scmp.eq.s32.totalorder %s14, 0
      %p62 = por %p60, %p61
      %p63 = scmp.ne.s32.totalorder %s55, %s57
      %p64 = scmp.eq.s32.totalorder %s19, 1
      %p65 = por %p63, %p64
      %p66 = scmp.ne.s32.totalorder %s57, %s58
      %p67 = scmp.eq.s32.totalorder %s19, 0
      %p68 = por %p66, %p67
      %p69 = scmp.ne.s32.totalorder %s57, %s58
      %p70 = scmp.eq.s32.totalorder %s20, 1
      %p71 = por %p69, %p70
      %p73 = scmp.ne.s32.totalorder %s58, %s72
      %p74 = scmp.eq.s32.totalorder %s20, 0
      %p75 = por %p73, %p74
      %s76 = ssub.s32 %s21, %s33
      %s77 = ssub.s32 %s22, %s29
      %s78 = sor.u32 %s76, %s77
      %p79 = scmp.eq.s32.totalorder %s78, 0
      %s81 = sadd.s32 %s80, 1
      %s82 = scalar_select %p79, %s80, %s81
      %p85 = pneg %p79
      %p86 = scmp.eq.s32.totalorder %s14, 1
      %p87 = por %p85, %p86
      %p88 = scmp.ne.s32.totalorder %s80, %s83
      %p89 = scmp.eq.s32.totalorder %s14, 0
      %p90 = por %p88, %p89
      %p91 = scmp.ne.s32.totalorder %s80, %s83
      %p92 = scmp.eq.s32.totalorder %s19, 1
      %p93 = por %p91, %p92
      %p94 = scmp.ne.s32.totalorder %s83, %s84
      %p95 = scmp.eq.s32.totalorder %s19, 0
      %p96 = por %p94, %p95
      %p97 = scmp.ne.s32.totalorder %s83, %s84
      %p98 = scmp.eq.s32.totalorder %s20, 1
      %p99 = por %p97, %p98
      %p101 = scmp.ne.s32.totalorder %s84, %s100
      %p102 = scmp.eq.s32.totalorder %s20, 0
      %p103 = por %p101, %p102
      %s104 = ssub.s32 %s21, %s33
      %s105 = ssub.s32 %s22, %s29
      %s106 = sor.u32 %s104, %s105
      %p107 = scmp.eq.s32.totalorder %s106, 0
      %s109 = sadd.s32 %s108, 1
      %s110 = scalar_select %p107, %s108, %s109
      %p113 = pneg %p107
      %p114 = scmp.eq.s32.totalorder %s14, 1
      %p115 = por %p113, %p114
      %p116 = scmp.ne.s32.totalorder %s108, %s111
      %p117 = scmp.eq.s32.totalorder %s14, 0
      %p118 = por %p116, %p117
      %p119 = scmp.ne.s32.totalorder %s108, %s111
      %p120 = scmp.eq.s32.totalorder %s19, 1
      %p121 = por %p119, %p120
      %p122 = scmp.ne.s32.totalorder %s111, %s112
      %p123 = scmp.eq.s32.totalorder %s19, 0
      %p124 = por %p122, %p123
      %p125 = scmp.ne.s32.totalorder %s111, %s112
      %p126 = scmp.eq.s32.totalorder %s20, 1
      %p127 = por %p125, %p126
      %p129 = scmp.ne.s32.totalorder %s112, %s128
      %p130 = scmp.eq.s32.totalorder %s20, 0
      %p131 = por %p129, %p130
      %p132 = scmp.le.s32.totalorder 1, %s14
      %p133 = scmp.lt.s32.totalorder %s14, 3
      %p134 = pnand %p132, %p133
      %p135 = pneg %p134
      // Predicated region
      $region9: #{_lambda_.1} parent=5 // pred_check
        _
      $region10: #{_lambda_.1} parent=5 // pred_check_branch
        %137 = sbr.rel (%p134) target = $region12
      $region11: #{_lambda_.1} parent=5 // pred_region
        %s138 = ssub.s32 %s14, 1
        // Predicated region
        $region13: #{_lambda_.1} parent=11 // pred_check
          %p139 = pneg %p47
        $region14: #{_lambda_.1} parent=11 // pred_check_branch
          %141 = sbr.rel (%p139) target = $region16
        $region15: #{_lambda_.1} parent=11 // pred_region
          %143 = vsyncadd [#allocation3], 0
          %s144 = sshll.u32 %s0, 4
          %s145 = int_to_ptr.hbm [resolvable:$true] %s144
          %s146 = sshll.u32 [#allocation2], 4
          %s147 = int_to_ptr.vmem [resolvable:$true] %s146
          %152 = dma.hbm_to_vmem [thread:$0]  %s145, 512, %s147, [#allocation3], 128, 128, 8
        $region16: #{_lambda_.1} parent=11 // pred_fallthru
          _
        // Predicated region
        $region17: #{_lambda_.1} parent=11 // pred_check
          %p153 = pneg %p68
        $region18: #{_lambda_.1} parent=11 // pred_check_branch
          %155 = sbr.rel (%p153) target = $region20
        $region19: #{_lambda_.1} parent=11 // pred_region
          %157 = vsyncadd [#allocation6], 0
          %s158 = sshll.u32 %s1, 4
          %s159 = int_to_ptr.hbm [resolvable:$true] %s158
          %s160 = sshll.u32 [#allocation5], 4
          %s161 = int_to_ptr.vmem [resolvable:$true] %s160
          %166 = dma.hbm_to_vmem [thread:$0]  %s159, 256, %s161, [#allocation6], 128, 128, 8
        $region20: #{_lambda_.1} parent=11 // pred_fallthru
          _
      $region12: #{_lambda_.1} parent=5 // pred_fallthru
        _
      %p167 = scmp.lt.s32.totalorder %s14, 2
      // Predicated region
      $region21: #{_lambda_.1} parent=5 // pred_check
        %p168 = pneg %p167
      $region22: #{_lambda_.1} parent=5 // pred_check_branch
        %170 = sbr.rel (%p168) target = $region24
      $region23: #{_lambda_.1} parent=5 // pred_region
        // Predicated region
        $region25: #{_lambda_.1} parent=23 // pred_check
          %p171 = pneg %p90
        $region26: #{_lambda_.1} parent=23 // pred_check_branch
          %173 = sbr.rel (%p171) target = $region28
        $region27: #{_lambda_.1} parent=23 // pred_region
          %s174 = sand.u32 %s14, 1
          %s175 = scalar_lea.sflag [#allocation3], %s174
          %s176 = sand.u32 %s80, 1
          %s177 = smul.addr %s176, 64
          %s178 = scalar_lea.vmem [#allocation7], %s177
          %s179 = smul.u32 4, %s22
          %181 = vsyncadd %s175, 0
          %s182 = smul.addr %s179, 2
          %s183 = smul.addr %s21, 8
          %s184 = sadd.s32 %s182, %s183
          %s185 = smul.addr %s184, 8
          %s186 = scalar_lea.hbm %s2, %s185
          %s187 = sshll.u32 %s186, 4
          %s188 = int_to_ptr.hbm [resolvable:$true] %s187
          %s189 = sshll.u32 %s178, 4
          %s190 = int_to_ptr.vmem [resolvable:$true] %s189
          %195 = dma.hbm_to_vmem [thread:$0]  %s188, 1024, %s190, %s175, 128, 128, 8
        $region28: #{_lambda_.1} parent=23 // pred_fallthru
          _
      $region24: #{_lambda_.1} parent=5 // pred_fallthru
        _
      %p196 = scmp.le.s32.totalorder 1, %s14
      %p197 = scmp.lt.s32.totalorder %s14, 3
      %p198 = pnand %p196, %p197
      %p199 = pneg %p198
      // Predicated region
      $region29: #{_lambda_.1} parent=5 // pred_check
        _
      $region30: #{_lambda_.1} parent=5 // pred_check_branch
        %201 = sbr.rel (%p198) target = $region32
      $region31: #{_lambda_.1} parent=5 // pred_region
        %s202 = ssub.s32 %s14, 1
        // Predicated region
        $region33: #{_lambda_.1} parent=31 // pred_check
          %p203 = pneg %p47
        $region34: #{_lambda_.1} parent=31 // pred_check_branch
          %205 = sbr.rel (%p203) target = $region36
        $region35: #{_lambda_.1} parent=31 // pred_region
          %207 = dma.done [#allocation3], 512
        $region36: #{_lambda_.1} parent=31 // pred_fallthru
          _
        // Predicated region
        $region37: #{_lambda_.1} parent=31 // pred_check
          %p208 = pneg %p68
        $region38: #{_lambda_.1} parent=31 // pred_check_branch
          %210 = sbr.rel (%p208) target = $region40
        $region39: #{_lambda_.1} parent=31 // pred_region
          %212 = dma.done [#allocation6], 256
        $region40: #{_lambda_.1} parent=31 // pred_fallthru
          _
        %s213 = sand.u32 %s19, 1
        %s214 = scalar_lea.sflag [#allocation3], %s213
        %s215 = sand.u32 %s83, 1
        %s216 = smul.addr %s215, 64
        %s217 = scalar_lea.vmem [#allocation7], %s216
        // Predicated region
        $region41: #{_lambda_.1} parent=31 // pred_check
          %p218 = pneg %p96
        $region42: #{_lambda_.1} parent=31 // pred_check_branch
          %220 = sbr.rel (%p218) target = $region44
        $region43: #{_lambda_.1} parent=31 // pred_region
          %222 = dma.done %s214, 1024
        $region44: #{_lambda_.1} parent=31 // pred_fallthru
          _
        %p223 = pneg %p47
        %p224 = pneg %p44
        %p225 = pneg %p68
        %p226 = pneg %p65
        %s227 = sand.u32 %s19, 1
        %s228 = scalar_lea.sflag [#allocation3], %s227
        %s229 = sand.u32 %s83, 1
        %s230 = smul.addr %s229, 64
        %s231 = scalar_lea.vmem [#allocation7], %s230
        %p232 = pneg %p96
        %p233 = pneg %p93
        %p234 = pneg %p124
        %p235 = pneg %p121
        %s236 = sand.u32 %s111, 1
        %s237 = scalar_lea.sflag [#allocation4], %s236
        %s238 = sand.u32 %s111, 1
        %s239 = smul.addr %s238, 128
        %s240 = scalar_lea.vmem [#allocation8], %s239
        %s241 = smul.u32 4, %s24
        %s242 = smul.u32 4, %s24
        %v243 = vld [vmem:[#allocation2] sm:$0xff]
        %v244 = vld [vmem:[#allocation2 + $0x8] sm:$0xff]
        %v245 = vld [vmem:[#allocation2 + $0x10] sm:$0xff]
        %v246 = vld [vmem:[#allocation2 + $0x18] sm:$0xff]
        %v247 = vld [vmem:[#allocation5] sm:$0xff]
        %v248 = vld [vmem:[#allocation5 + $0x8] sm:$0xff]
        loop: start=0, step=1, limit=4
        $region45: #{_lambda_.1} parent=31 // loop_pre_header
          _
        $region46: #{_lambda_.1} parent=31 // loop_header
          %s250 = sphi 0, %s254
          %p251 = scmp.ge.s32.totalorder %s250, 4
        $region47: #{_lambda_.1} parent=31 // loop_header_branch
          %253 = sbr.rel (%p251) target = $region51
        $region48: #{_lambda_.1} parent=31 // loop_body
          %s255 = smul.u32 %s250, 16
          %s256 = scalar_lea.vmem %s217, %s255 [#allocation7]
          %v257 = vld [vmem:[%s256] sm:$0xff]
          %v258 = vld [vmem:[%s256 + $0x8] sm:$0xff]
          %vm259 = vcmask 130048
          %v261 = vsel %vm259, %v243, 0
          %v264 = vsel %vm259, %v244, 0
          %v267 = vsel %vm259, %v245, 0
          %v270 = vsel %vm259, %v246, 0
          %272 = vmatpush.msra.mxu0 0.0
          %273 = vmatpush.msra.mxu0 0.0
          %274 = vmatpush.msra.mxu0 0.0
          %275 = vmatpush.msra.mxu0 0.0
          %276 = vmatpush.msra.mxu0 0.0
          %277 = vmatpush.msra.mxu0 0.0
          %278 = vmatpush.msra.mxu0 0.0
          %279 = vmatpush.msra.mxu0 0.0
          %280 = vmatpush.msra.mxu0 0.0
          %281 = vmatpush.msra.mxu0 0.0
          %282 = vmatpush.msra.mxu0 0.0
          %283 = vmatpush.msra.mxu0 0.0
          %284 = vmatpush.msra.mxu0 0.0
          %285 = vmatpush.msra.mxu0 0.0
          %286 = vmatpush.msra.mxu0 %v258
          %287 = vmatpush.msra.mxu0 %v257
          %288 = vmatmul.f32.gmra.mxu0 %v261
          %v289 = vpop.f32.mrf.mxu0
          %v290 = vadd.f32 0.0, %v289
          %291 = vmatmul.f32.gmra.mxu0 %v264
          %v292 = vpop.f32.mrf.mxu0
          %v293 = vadd.f32 0.0, %v292
          %294 = vmatmul.f32.gmra.mxu0 %v267
          %v295 = vpop.f32.mrf.mxu0
          %v296 = vadd.f32 0.0, %v295
          %297 = vmatmul.f32.gmra.mxu0 %v270
          %v298 = vpop.f32.mrf.mxu0
          %v299 = vadd.f32 0.0, %v298
          %300 = vdwg.mxu0
          %v302 = vsel %vm259, %v290, 0
          %v305 = vsel %vm259, %v293, 0
          %v308 = vsel %vm259, %v296, 0
          %v311 = vsel %vm259, %v299, 0
          %313 = vmatpush.msra.mxu0 0.0
          %314 = vmatpush.msra.mxu0 0.0
          %315 = vmatpush.msra.mxu0 0.0
          %316 = vmatpush.msra.mxu0 0.0
          %317 = vmatpush.msra.mxu0 0.0
          %318 = vmatpush.msra.mxu0 0.0
          %319 = vmatpush.msra.mxu0 0.0
          %320 = vmatpush.msra.mxu0 0.0
          %321 = vmatpush.msra.mxu0 0.0
          %322 = vmatpush.msra.mxu0 0.0
          %323 = vmatpush.msra.mxu0 0.0
          %324 = vmatpush.msra.mxu0 0.0
          %325 = vmatpush.msra.mxu0 0.0
          %326 = vmatpush.msra.mxu0 0.0
          %327 = vmatpush.msra.mxu0 %v248
          %328 = vmatpush.msra.mxu0 %v247
          %329 = vmatmul.f32.gmra.mxu0 %v302
          %v330 = vpop.f32.mrf.mxu0
          %v331 = vadd.f32 0.0, %v330
          %332 = vmatmul.f32.gmra.mxu0 %v305
          %v333 = vpop.f32.mrf.mxu0
          %v334 = vadd.f32 0.0, %v333
          %335 = vmatmul.f32.gmra.mxu0 %v308
          %v336 = vpop.f32.mrf.mxu0
          %v337 = vadd.f32 0.0, %v336
          %338 = vmatmul.f32.gmra.mxu0 %v311
          %v339 = vpop.f32.mrf.mxu0
          %v340 = vadd.f32 0.0, %v339
          %341 = vdwg.mxu0
          %s342 = smul.u32 %s250, 32
          %s343 = scalar_lea.vmem %s240, %s342 [#allocation8]
          %vm344 = vcmask 261120
          %345 = vst.msk [vmem:[%s343] sm:$0xff] %vm344, %v331
          %346 = vst.msk [vmem:[%s343 + $0x8] sm:$0xff] %vm344, %v334
          %347 = vst.msk [vmem:[%s343 + $0x10] sm:$0xff] %vm344, %v337
          %348 = vst.msk [vmem:[%s343 + $0x18] sm:$0xff] %vm344, %v340
        $region49: #{_lambda_.1} parent=31 // loop_footer
          %s254 = sadd.s32 1, %s250
        $region50: #{_lambda_.1} parent=31 // loop_footer_branch
          %249 = sbr.rel target = $region46
        $region51: #{_lambda_.1} parent=31 // loop_exit
          _
        %s349 = sand.u32 %s111, 1
        %s350 = scalar_lea.sflag [#allocation4], %s349
        %s351 = sand.u32 %s111, 1
        %s352 = smul.addr %s351, 128
        %s353 = scalar_lea.vmem [#allocation8], %s352
        // Predicated region
        $region52: #{_lambda_.1} parent=31 // pred_check
          %p354 = pneg %p121
        $region53: #{_lambda_.1} parent=31 // pred_check_branch
          %356 = sbr.rel (%p354) target = $region55
        $region54: #{_lambda_.1} parent=31 // pred_region
          %s357 = smul.u32 4, %s24
          %359 = vsyncadd %s350, 0
          %s360 = smul.addr %s357, 4
          %s361 = smul.addr %s23, 16
          %s362 = sadd.s32 %s360, %s361
          %s363 = smul.addr %s362, 8
          %s364 = scalar_lea.hbm %s3, %s363
          %s365 = sshll.u32 %s353, 4
          %s366 = int_to_ptr.vmem [resolvable:$true] %s365
          %s367 = sshll.u32 %s364, 4
          %s368 = int_to_ptr.hbm [resolvable:$true] %s367
          %373 = dma.vmem_to_hbm [thread:$0]  %s366, 2048, %s368, %s350, 128, 128, 8
        $region55: #{_lambda_.1} parent=31 // pred_fallthru
          _
      $region32: #{_lambda_.1} parent=5 // pred_fallthru
        _
      %p374 = scmp.le.s32.totalorder 2, %s14
      // Predicated region
      $region56: #{_lambda_.1} parent=5 // pred_check
        %p375 = pneg %p374
      $region57: #{_lambda_.1} parent=5 // pred_check_branch
        %377 = sbr.rel (%p375) target = $region59
      $region58: #{_lambda_.1} parent=5 // pred_region
        %s378 = ssub.s32 %s14, 2
        // Predicated region
        $region60: #{_lambda_.1} parent=58 // pred_check
          %p379 = pneg %p127
        $region61: #{_lambda_.1} parent=58 // pred_check_branch
          %381 = sbr.rel (%p379) target = $region63
        $region62: #{_lambda_.1} parent=58 // pred_region
          %s382 = sand.u32 %s112, 1
          %s383 = scalar_lea.sflag [#allocation4], %s382
          %s384 = sand.u32 %s112, 1
          %s385 = smul.addr %s384, 128
          %s386 = scalar_lea.vmem [#allocation8], %s385
          %388 = dma.done %s383, 2048
        $region63: #{_lambda_.1} parent=58 // pred_fallthru
          _
      $region59: #{_lambda_.1} parent=5 // pred_fallthru
        _
    $region6: #{_lambda_.1} parent=1 // loop_footer
      %s18 = sadd.s32 1, %s14
    $region7: #{_lambda_.1} parent=1 // loop_footer_branch
      %13 = sbr.rel target = $region3
    $region8: #{_lambda_.1} parent=1 // loop_exit
      _
    %389 = vsyncpa [#allocation3], 1
    %s390 = scalar_lea.sflag [#allocation3], 1
    %391 = vsyncpa %s390, 1
    %392 = vsyncpa [#allocation6], 1
    %393 = vsyncpa [#allocation4], 1
    %s394 = scalar_lea.sflag [#allocation4], 1
    %395 = vsyncpa %s394, 1

</llo_original>
